<compile_context>
chip_gen: v7x
topology: tpu7x:2x2x1
jax: 0.10.0
libtpu: 0.0.40
codegen_flags: <defaults>
</compile_context>

<pallas_src>
import functools

import jax
import jax.numpy as jnp
from jax.experimental import pallas as pl
from jax.experimental.pallas import tpu as pltpu


def _round_up(x, m):
    return ((x + m - 1) // m) * m


def _choose_tb(batch):
    """Batch tile.

    Tiny batches (< 256 rows): one grid step with tb == batch (megacore sharding
    buys nothing; every extra step costs ~0.35 us).  Larger batches: biggest tile
    (<= 2048) that still leaves >= 2 grid steps so v7x's two TensorCores both get
    work; ragged remainders go through the masked last partial block, not padding.
    """
    if batch < 256:
        return max(int(batch), 1)
    for t in (2048, 1024, 512, 256, 128):
        if batch >= 2 * t:
            return t
    return 128


def _vmem_capacity_bytes():
    # v7x has 64 MiB VMEM per TensorCore (v5e/v6e: 128 MiB); query instead of
    # hard-coding a ceiling that over-asks on v7x.
    try:
        return int(pltpu.get_tpu_info().vmem_capacity_bytes)
    except Exception:
        return 64 * 2**20


def _make_mlp_kernel(in_dims):
    n_in = len(in_dims)
    lane_offs = []
    off = 0
    for d in in_dims:
        lane_offs.append(off)
        off += d

    if n_in == 1:
        def kernel(x_ref, w1_ref, b1_ref, w2_ref, b2_ref, o_ref):
            h = jnp.dot(x_ref[...].astype(w1_ref.dtype), w1_ref[...],
                        preferred_element_type=jnp.float32)
            h = jnp.maximum(h + b1_ref[...], 0.0)
            out = jnp.dot(h.astype(w2_ref.dtype), w2_ref[...],
                          preferred_element_type=jnp.float32) + b2_ref[...]
            o_ref[...] = out.astype(o_ref.dtype)
        return kernel

    def kernel(*refs):
        x_refs = refs[:n_in]
        w1_ref, b1_ref, w2_ref, b2_ref, o_ref, xcat_ref = refs[n_in:]
        # torch.cat(dim=1) fused: stage each input block at its static lane offset
        # in a VMEM scratch, then a single MXU pass over the packed K dimension.
        for xr, lo, d in zip(x_refs, lane_offs, in_dims):
            xcat_ref[:, lo:lo + d] = xr[...].astype(xcat_ref.dtype)
        h = jnp.dot(xcat_ref[...].astype(w1_ref.dtype), w1_ref[...],
                    preferred_element_type=jnp.float32)
        h = jnp.maximum(h + b1_ref[...], 0.0)                      # bias + ReLU (VPU)
        out = jnp.dot(h.astype(w2_ref.dtype), w2_ref[...],
                      preferred_element_type=jnp.float32) + b2_ref[...]
        o_ref[...] = out.astype(o_ref.dtype)                       # unpadded (masked) store
    return kernel


@functools.partial(jax.jit, static_argnames=("tb",))
def _mlp_forward(xs, w1, b1, w2, b2, *, tb):
    n_in = len(xs)
    batch = xs[0].shape[0]
    in_dims = tuple(x.shape[1] for x in xs)
    k_total = sum(in_dims)
    hp = w2.shape[0]          # hidden (padded to a multiple of 128)
    d_out = w2.shape[1]       # true output width -- NOT lane-padded
    grid = (pl.cdiv(batch, tb),)

    resident = dict(pipeline_mode=pl.Buffered(1))   # constant-index blocks: 1 buffer
    x_specs = [pl.BlockSpec((tb, d), lambda i: (i, 0)) for d in in_dims]
    w_specs = [
        pl.BlockSpec((k_total, hp), lambda i: (0, 0), **resident),   # w1 (packed K)
        pl.BlockSpec((1, hp), lambda i: (0, 0), **resident),         # b1
        pl.BlockSpec((hp, d_out), lambda i: (0, 0), **resident),     # w2
        pl.BlockSpec((1, d_out), lambda i: (0, 0), **resident),      # b2
    ]

    scratch_shapes = []
    if n_in > 1:
        scratch_shapes.append(pltpu.VMEM((tb, k_total), jnp.float32))

    flops = 2 * batch * (k_total * hp + hp * d_out)
    weight_bytes = (int(w1.size) * w1.dtype.itemsize + int(b1.size) * b1.dtype.itemsize
                    + int(w2.size) * w2.dtype.itemsize + int(b2.size) * b2.dtype.itemsize)
    in_bytes = sum(int(x.size) * x.dtype.itemsize for x in xs)
    out_bytes = batch * d_out * 4
    tile_bytes = tb * (sum(int(x.dtype.itemsize) * d for x, d in zip(xs, in_dims))
                       + d_out * 4 + k_total * 4)
    need = weight_bytes + 2 * tile_bytes
    cap = _vmem_capacity_bytes()
    vmem_limit = int(min(cap - (8 << 20), max(16 << 20, 4 * need)))
    vmem_limit = max(vmem_limit, 4 << 20)

    return pl.pallas_call(
        _make_mlp_kernel(in_dims),
        out_shape=jax.ShapeDtypeStruct((batch, d_out), jnp.float32),
        grid_spec=pltpu.PrefetchScalarGridSpec(
            num_scalar_prefetch=0,
            grid=grid,
            in_specs=x_specs + w_specs,
            out_specs=pl.BlockSpec((tb, d_out), lambda i: (i, 0)),
            scratch_shapes=scratch_shapes,
        ),
        compiler_params=pltpu.CompilerParams(
            dimension_semantics=("parallel",),
            vmem_limit_bytes=vmem_limit,
        ),
        cost_estimate=pl.CostEstimate(
            flops=flops, transcendentals=0,
            bytes_accessed=in_bytes + weight_bytes + out_bytes),
    )(*xs, w1, b1, w2, b2)


class PallasModel:
    """JAX/Pallas counterpart of the PyTorch `Model` wrapper.

    Collects the named inputs (in self.inputs order); torch.cat(dim=1) and the
    wrapped 2-layer MLP run fused inside a single Pallas TPU kernel.
    """

    def __init__(self, inputs, input_dims, hidden_dim, out_dim, key):
        self.inputs = list(inputs)
        self.input_dims = tuple(input_dims)
        in_dim = sum(self.input_dims)
        self.n_out = out_dim

        k1, k2, k3, k4 = jax.random.split(key, 4)
        # True f32 parameters (deterministic synthetic, no checkpoint load).
        self.w1 = jax.random.normal(k1, (in_dim, hidden_dim), jnp.float32) / jnp.sqrt(in_dim)
        self.b1 = jax.random.normal(k2, (1, hidden_dim), jnp.float32) * 0.01
        self.w2 = jax.random.normal(k3, (hidden_dim, out_dim), jnp.float32) / jnp.sqrt(hidden_dim)
        self.b2 = jax.random.normal(k4, (1, out_dim), jnp.float32) * 0.01

        # Kernel-side params: bf16 weights; hidden padded to a 128 multiple (exact:
        # padded hidden units are ReLU(0)=0 and their w2 rows are 0); out_dim is
        # NOT padded (masked store, 8x less writeback at out_dim=16).
        hp = _round_up(hidden_dim, 128)
        self.w1_p = jnp.pad(self.w1, ((0, 0), (0, hp - hidden_dim))).astype(jnp.bfloat16)
        self.b1_p = jnp.pad(self.b1, ((0, 0), (0, hp - hidden_dim)))
        self.w2_p = jnp.pad(self.w2, ((0, hp - hidden_dim), (0, 0))).astype(jnp.bfloat16)
        self.b2_p = self.b2

    def forward(self, **kwargs):
        collected = []
        for k in self.inputs:
            if k in kwargs:
                collected.append(kwargs[k])
            else:
                raise KeyError(f"missing input '{k}'")          # InputError analogue
        batch = collected[0].shape[0]
        tb = _choose_tb(batch)
        # Output is exactly (batch, n_out): no wrapper-side padding, no post-slice.
        return _mlp_forward(tuple(collected), self.w1_p, self.b1_p,
                            self.w2_p, self.b2_p, tb=tb)

    # TODO(synk): recurrent hidden-state management (reset/planning_mode/acting_mode/
    # detach/attach_hidden_state) only applies to RNN networks; no-ops for this MLP.
    def reset(self, batch_size=0):
        pass

    def planning_mode(self, batch_size=0):
        pass

    def acting_mode(self):
        pass

    def detach_hidden_state(self):
        pass

    def attach_hidden_state(self):
        pass


def _reference_bf16(state, action, w1, b1, w2, b2):
    # Same numerics as the kernel (bf16 matmul inputs, f32 accumulate).
    x = jnp.concatenate([state, action], axis=1)
    h = jnp.dot(x.astype(jnp.bfloat16), w1.astype(jnp.bfloat16),
                preferred_element_type=jnp.float32) + b1
    h = jnp.maximum(h, 0.0)
    return jnp.dot(h.astype(jnp.bfloat16), w2.astype(jnp.bfloat16),
                   preferred_element_type=jnp.float32) + b2


def _reference_f32(state, action, w1, b1, w2, b2):
    x = jnp.concatenate([state, action], axis=1)
    h = jnp.maximum(x @ w1 + b1, 0.0)
    return h @ w2 + b2


if __name__ == "__main__":
    key = jax.random.PRNGKey(0)
    k_state, k_action, k_params = jax.random.split(key, 3)

    batch = 10                      # ragged/tiny batch: single-step path, no padding
    state_dim, action_dim = 24, 8   # concat along dim=1 -> in_dim = 32
    hidden_dim, out_dim = 32, 16

    state = jax.random.normal(k_state, (batch, state_dim), jnp.float32)
    action = jax.random.normal(k_action, (batch, action_dim), jnp.float32)

    model = PallasModel(inputs=["state", "action"],
                        input_dims=[state_dim, action_dim],
                        hidden_dim=hidden_dim, out_dim=out_dim, key=k_params)

    out = model.forward(state=state, action=action)
    out = jax.block_until_ready(out)

    ref_bf16 = _reference_bf16(state, action, model.w1, model.b1, model.w2, model.b2)
    ref_f32 = _reference_f32(state, action, model.w1, model.b1, model.w2, model.b2)

    assert out.shape == (batch, out_dim)
    assert out.dtype == jnp.float32
    assert jnp.allclose(out, ref_bf16, atol=1e-3, rtol=1e-3), "mismatch vs bf16 reference"
    assert jnp.allclose(out, ref_f32, atol=1e-1, rtol=1e-1), "mismatch vs f32 reference"

    print("KERNEL_OK")
</pallas_src>

<mosaic_0001>
module attributes {stable_mosaic.version = 11 : i64} {
  func.func @kernel(%arg0: i32, %arg1: memref<10x24xf32, #tpu.memory_space<vmem>>, %arg2: memref<10x8xf32, #tpu.memory_space<vmem>>, %arg3: memref<32x128xbf16, #tpu.memory_space<vmem>>, %arg4: memref<1x128xf32, #tpu.memory_space<vmem>>, %arg5: memref<128x16xbf16, #tpu.memory_space<vmem>>, %arg6: memref<1x16xf32, #tpu.memory_space<vmem>>, %arg7: memref<10x16xf32, #tpu.memory_space<vmem>>, %arg8: memref<10x32xf32, #tpu.memory_space<vmem>>) attributes {dimension_semantics = [#tpu.dimension_semantics<parallel>], iteration_bounds = array<i64: 1>, scalar_prefetch = 0 : i64, scratch_operands = 1 : i64, tpu.core_type = #tpu.core_type<tc>, window_params = [{transform_indices = @transform_0, window_bounds = array<i64: 10, 24>}, {transform_indices = @transform_1, window_bounds = array<i64: 10, 8>}, {pipeline_mode = #tpu.pipeline_mode<synchronous>, transform_indices = @transform_2, window_bounds = array<i64: 32, 128>}, {pipeline_mode = #tpu.pipeline_mode<synchronous>, transform_indices = @transform_3, window_bounds = array<i64: 1, 128>}, {pipeline_mode = #tpu.pipeline_mode<synchronous>, transform_indices = @transform_4, window_bounds = array<i64: 128, 16>}, {pipeline_mode = #tpu.pipeline_mode<synchronous>, transform_indices = @transform_5, window_bounds = array<i64: 1, 16>}, {transform_indices = @transform_6, window_bounds = array<i64: 10, 16>}]} {
    %c0 = arith.constant 0 : index
    %c0_0 = arith.constant 0 : index
    %0 = vector.load %arg1[%c0, %c0_0] : memref<10x24xf32, #tpu.memory_space<vmem>>, vector<10x24xf32>
    %c0_1 = arith.constant 0 : index
    %c0_2 = arith.constant 0 : index
    %1 = vector.load %arg8[%c0_1, %c0_2] : memref<10x32xf32, #tpu.memory_space<vmem>>, vector<10x24xf32>
    tpu.vector_store %arg8[%c0_1, %c0_2], %0 {strides = array<i32>} : memref<10x32xf32, #tpu.memory_space<vmem>>, vector<10x24xf32>,
    %c0_3 = arith.constant 0 : index
    %c0_4 = arith.constant 0 : index
    %2 = vector.load %arg2[%c0_3, %c0_4] : memref<10x8xf32, #tpu.memory_space<vmem>>, vector<10x8xf32>
    %c0_5 = arith.constant 0 : index
    %c24 = arith.constant 24 : index
    %3 = vector.load %arg8[%c0_5, %c24] : memref<10x32xf32, #tpu.memory_space<vmem>>, vector<10x8xf32>
    tpu.vector_store %arg8[%c0_5, %c24], %2 {strides = array<i32>} : memref<10x32xf32, #tpu.memory_space<vmem>>, vector<10x8xf32>,
    %c0_6 = arith.constant 0 : index
    %c0_7 = arith.constant 0 : index
    %4 = vector.load %arg8[%c0_6, %c0_7] : memref<10x32xf32, #tpu.memory_space<vmem>>, vector<10x32xf32>
    %5 = arith.truncf %4 : vector<10x32xf32> to vector<10x32xbf16>
    %c0_8 = arith.constant 0 : index
    %c0_9 = arith.constant 0 : index
    %6 = vector.load %arg3[%c0_8, %c0_9] : memref<32x128xbf16, #tpu.memory_space<vmem>>, vector<32x128xbf16>
    %cst = arith.constant dense<0.000000e+00> : vector<10x128xf32>
    %7 = tpu.matmul %5, %6, %cst {dimension_numbers = #tpu.dot_dimension_numbers<[1], [0], [0], [1], [0, 0, 1, 1], [], []>} : vector<10x32xbf16>, vector<32x128xbf16>, vector<10x128xf32> -> vector<10x128xf32>
    %c0_10 = arith.constant 0 : index
    %c0_11 = arith.constant 0 : index
    %8 = vector.load %arg4[%c0_10, %c0_11] : memref<1x128xf32, #tpu.memory_space<vmem>>, vector<1x128xf32>
    %9 = vector.broadcast %8 : vector<1x128xf32> to vector<10x128xf32>
    %10 = arith.addf %7, %9 : vector<10x128xf32>
    %cst_12 = arith.constant 0.000000e+00 : f32
    %11 = vector.broadcast %cst_12 : f32 to vector<10x128xf32>
    %12 = arith.maximumf %10, %11 : vector<10x128xf32>
    %13 = arith.truncf %12 : vector<10x128xf32> to vector<10x128xbf16>
    %c0_13 = arith.constant 0 : index
    %c0_14 = arith.constant 0 : index
    %14 = vector.load %arg5[%c0_13, %c0_14] : memref<128x16xbf16, #tpu.memory_space<vmem>>, vector<128x16xbf16>
    %cst_15 = arith.constant dense<0.000000e+00> : vector<10x16xf32>
    %15 = tpu.matmul %13, %14, %cst_15 {dimension_numbers = #tpu.dot_dimension_numbers<[1], [0], [0], [1], [0, 0, 1, 1], [], []>} : vector<10x128xbf16>, vector<128x16xbf16>, vector<10x16xf32> -> vector<10x16xf32>
    %c0_16 = arith.constant 0 : index
    %c0_17 = arith.constant 0 : index
    %16 = vector.load %arg6[%c0_16, %c0_17] : memref<1x16xf32, #tpu.memory_space<vmem>>, vector<1x16xf32>
    %17 = vector.broadcast %16 : vector<1x16xf32> to vector<10x16xf32>
    %18 = arith.addf %15, %17 : vector<10x16xf32>
    %c0_18 = arith.constant 0 : index
    %c0_19 = arith.constant 0 : index
    %19 = vector.load %arg7[%c0_18, %c0_19] : memref<10x16xf32, #tpu.memory_space<vmem>>, vector<10x16xf32>
    tpu.vector_store %arg7[%c0_18, %c0_19], %18 {strides = array<i32>} : memref<10x16xf32, #tpu.memory_space<vmem>>, vector<10x16xf32>,
    return
  }
  func.func @transform_0(%arg0: i32) -> (i32, i32) {
    %c0_i32 = arith.constant 0 : i32
    %c0_i32_0 = arith.constant 0 : i32
    return %arg0, %c0_i32 : i32, i32
  }
  func.func @transform_1(%arg0: i32) -> (i32, i32) {
    %c0_i32 = arith.constant 0 : i32
    %c0_i32_0 = arith.constant 0 : i32
    return %arg0, %c0_i32 : i32, i32
  }
  func.func @transform_2(%arg0: i32) -> (i32, i32) {
    %c0_i32 = arith.constant 0 : i32
    %c0_i32_0 = arith.constant 0 : i32
    %c0_i32_1 = arith.constant 0 : i32
    return %c0_i32, %c0_i32_0 : i32, i32
  }
  func.func @transform_3(%arg0: i32) -> (i32, i32) {
    %c0_i32 = arith.constant 0 : i32
    %c0_i32_0 = arith.constant 0 : i32
    %c0_i32_1 = arith.constant 0 : i32
    return %c0_i32, %c0_i32_0 : i32, i32
  }
  func.func @transform_4(%arg0: i32) -> (i32, i32) {
    %c0_i32 = arith.constant 0 : i32
    %c0_i32_0 = arith.constant 0 : i32
    %c0_i32_1 = arith.constant 0 : i32
    return %c0_i32, %c0_i32_0 : i32, i32
  }
  func.func @transform_5(%arg0: i32) -> (i32, i32) {
    %c0_i32 = arith.constant 0 : i32
    %c0_i32_0 = arith.constant 0 : i32
    %c0_i32_1 = arith.constant 0 : i32
    return %c0_i32, %c0_i32_0 : i32, i32
  }
  func.func @transform_6(%arg0: i32) -> (i32, i32) {
    %c0_i32 = arith.constant 0 : i32
    %c0_i32_0 = arith.constant 0 : i32
    return %arg0, %c0_i32 : i32, i32
  }
}

</mosaic_0001>

<llo_original>
// kernel: _mlp_forward.1
$region0: #{_mlp_forward.1}
  #allocation0 [shape = 'u32[]', space=smem, size = 0x4, offset = 0x4, fixed_abs, tag = 'smem constant byte address 0x4 - core index']
  #allocation1 [shape = 'u32[144,128]{1,0:T(1,128)}', space=vmem, size = 0x12000, scoped, tag = 'internal scratch']
  #allocation2 [shape = 'f32[10,32]{1,0:T(8,128)}', space=vmem, size = 0x2000, scoped, tag = 'scratch operand']
  %s0 = inlined_call_operand.vmem [shape: f32[10,24], index: 0, kind: input, shape index: {}]
  %s1 = inlined_call_operand.vmem [shape: f32[10,8], index: 1, kind: input, shape index: {}]
  %s2 = inlined_call_operand.vmem [shape: bf16[32,128], index: 2, kind: input, shape index: {}]
  %s3 = inlined_call_operand.vmem [shape: f32[1,128], index: 3, kind: input, shape index: {}]
  %s4 = inlined_call_operand.vmem [shape: bf16[128,16], index: 4, kind: input, shape index: {}]
  %s5 = inlined_call_operand.vmem [shape: f32[1,16], index: 5, kind: input, shape index: {}]
  %s6 = inlined_call_operand.hbm [shape: f32[10,16], index: 6, kind: output, shape index: {}]
  %s7 = sld [smem:[#allocation0]]
  $region34: #{_mlp_forward.1} parent=0
    _
  %s9 = ssub.s32 1, %s7
  %s10 = scalar_select 0, %s9, %s7
  $region1: #{_mlp_forward.1} parent=0
    #allocation3 [shape = 'u8[8192]{0}', space=vmem, size = 0x2000, scoped, tag = 'output window, operand 0, single buffered']
    #allocation4 [shape = 's32[1]{0}', space=sflag, size = 0x4, scoped, tag = 'scoped memory for _mlp_forward.1']
    %11 = vsyncpa [#allocation4], 0
    // Predicated region
    $region2: #{_mlp_forward.1} parent=1 // pred_check
      _
    $region3: #{_mlp_forward.1} parent=1 // pred_check_branch
      %13 = sbr.rel (0) target = $region5
    $region4: #{_mlp_forward.1} parent=1 // pred_region
      _
    $region5: #{_mlp_forward.1} parent=1 // pred_fallthru
      _
    // Predicated region
    $region6: #{_mlp_forward.1} parent=1 // pred_check
      _
    $region7: #{_mlp_forward.1} parent=1 // pred_check_branch
      %15 = sbr.rel (0) target = $region9
    $region8: #{_mlp_forward.1} parent=1 // pred_region
      _
    $region9: #{_mlp_forward.1} parent=1 // pred_fallthru
      _
    // Predicated region
    $region10: #{_mlp_forward.1} parent=1 // pred_check
      _
    $region11: #{_mlp_forward.1} parent=1 // pred_check_branch
      %17 = sbr.rel (0) target = $region13
    $region12: #{_mlp_forward.1} parent=1 // pred_region
      _
    $region13: #{_mlp_forward.1} parent=1 // pred_fallthru
      _
    // Predicated region
    $region14: #{_mlp_forward.1} parent=1 // pred_check
      _
    $region15: #{_mlp_forward.1} parent=1 // pred_check_branch
      %19 = sbr.rel (0) target = $region17
    $region16: #{_mlp_forward.1} parent=1 // pred_region
      _
    $region17: #{_mlp_forward.1} parent=1 // pred_fallthru
      _
    // Predicated region
    $region18: #{_mlp_forward.1} parent=1 // pred_check
      _
    $region19: #{_mlp_forward.1} parent=1 // pred_check_branch
      %21 = sbr.rel (0) target = $region21
    $region20: #{_mlp_forward.1} parent=1 // pred_region
      _
    $region21: #{_mlp_forward.1} parent=1 // pred_fallthru
      _
    // Predicated region
    $region22: #{_mlp_forward.1} parent=1 // pred_check
      _
    $region23: #{_mlp_forward.1} parent=1 // pred_check_branch
      %23 = sbr.rel (0) target = $region25
    $region24: #{_mlp_forward.1} parent=1 // pred_region
      _
    $region25: #{_mlp_forward.1} parent=1 // pred_fallthru
      _
    %v25 = vld [vmem:[%s0] sm:$0xff]
    %v26 = vld [vmem:[%s0 + $0x8] sm:$0x3]
    %vm27 = vcmask 195584
    %28 = vst.msk [vmem:[#allocation2] sm:$0xff] %vm27, %v25
    %vm29 = vcmask 189440
    %30 = vst.msk [vmem:[#allocation2 + $0x8] sm:$0x3] %vm29, %v26
    %v31 = vld [vmem:[%s1] sm:$0xff]
    %v32 = vld [vmem:[%s1 + $0x8] sm:$0x3]
    %35 = vrot.lane.b32.xlu0 %v31, 24
    %v36 = vpop.permute.xlu0 %35
    %37 = vrot.lane.b32.xlu0 %v32, 24
    %v38 = vpop.permute.xlu0 %37
    %vm41 = vcmask 261312
    %42 = vst.msk [vmem:[#allocation2] sm:$0xff] %vm41, %v36
    %vm43 = vcmask 255168
    %44 = vst.msk [vmem:[#allocation2 + $0x8] sm:$0x3] %vm43, %v38
    %v45 = vld [vmem:[#allocation2] sm:$0xff]
    %v46 = vld [vmem:[#allocation2 + $0x8] sm:$0x3]
    %v47 = vpack.c.bf16 %v46, %v45
    %v48 = vld [vmem:[%s2] sm:$0xf]
    %v49 = vld [vmem:[%s2 + $0x4] sm:$0xf]
    %v50 = vld [vmem:[%s2 + $0x8] sm:$0xf]
    %v51 = vld [vmem:[%s2 + $0xc] sm:$0xf]
    %v52 = vld [vmem:[%s3] sm:$0x1]
    %v54 = vlaneseq
    %v55 = vshrl.u32 %v54, 7
    %v56 = vsub.s32 0, %v55
    %v57 = vrot.slane %v52, %v56
    %v63 = vunpack.c.l.b16 %v48
    %v64 = vunpack.c.l.b16 %v49
    %v65 = vunpack.c.l.b16 %v50
    %v66 = vunpack.c.l.b16 %v51
    %v67 = vpack.c.b16 %v64, %v63
    %v68 = vpack.c.b16 %v66, %v65
    %vm71 = vcmask 261120
    %v73 = vsel %vm71, %v47, 0
    %75 = vmatprep.subr.bf16.mxu0 0
    %76 = vmatpush1.bf16.msra.mxu0 %v67
    %77 = vmatprep.subr.bf16.mxu0 0
    %78 = vmatpush1.bf16.msra.mxu0 %v68
    %79 = vmatprep.subr.bf16.mxu0 0
    %80 = vmatpush1.bf16.msra.mxu0 0
    %81 = vmatprep.subr.bf16.mxu0 0
    %82 = vmatpush1.bf16.msra.mxu0 0
    %83 = vmatprep.subr.bf16.mxu0 0
    %84 = vmatpush1.bf16.msra.mxu0 0
    %85 = vmatprep.subr.bf16.mxu0 0
    %86 = vmatpush1.bf16.msra.mxu0 0
    %87 = vmatprep.subr.bf16.mxu0 0
    %88 = vmatpush1.bf16.msra.mxu0 0
    %89 = vmatprep.subr.bf16.mxu0 0
    %90 = vmatpush1.bf16.msra.mxu0 0
    %91 = vmatprep.subr.bf16.mxu0 0
    %92 = vmatpush1.bf16.msra.mxu0 0
    %93 = vmatprep.subr.bf16.mxu0 0
    %94 = vmatpush1.bf16.msra.mxu0 0
    %95 = vmatprep.subr.bf16.mxu0 0
    %96 = vmatpush1.bf16.msra.mxu0 0
    %97 = vmatprep.subr.bf16.mxu0 0
    %98 = vmatpush1.bf16.msra.mxu0 0
    %99 = vmatprep.subr.bf16.mxu0 0
    %100 = vmatpush1.bf16.msra.mxu0 0
    %101 = vmatprep.subr.bf16.mxu0 0
    %102 = vmatpush1.bf16.msra.mxu0 0
    %103 = vmatprep.subr.bf16.mxu0 0
    %104 = vmatpush1.bf16.msra.mxu0 0
    %105 = vmatprep.subr.bf16.mxu0 0
    %106 = vmatpush1.bf16.msra.mxu0 0
    %107 = vmatprep.mubr.bf16.mxu0 0
    %108 = vmatmul.mubr.bf16.gmra.mrb[0].mxu0 %v73
    %v109 = vpop.f32.mrb[0].mxu0
    %v110 = vadd.f32 %v57, %v109
    %v111 = vpop.f32.mrb[0].mxu0
    %v112 = vpop.f32.mrb[0].mxu0
    %v113 = vadd.f32 %v57, %v112
    %v114 = vpop.f32.mrb[0].mxu0
    %115 = vdwg.mxu0
    %v116 = vmax.f32 %v110, 0.0
    %v117 = vmax.f32 %v113, 0.0
    %v118 = vpack.c.bf16 %v117, %v116
    %v119 = vld [vmem:[%s4] sm:$0xf]
    %v120 = vld [vmem:[%s4 + $0x4] sm:$0xf]
    %v121 = vld [vmem:[%s4 + $0x8] sm:$0xf]
    %v122 = vld [vmem:[%s4 + $0xc] sm:$0xf]
    %v123 = vld [vmem:[%s4 + $0x10] sm:$0xf]
    %v124 = vld [vmem:[%s4 + $0x14] sm:$0xf]
    %v125 = vld [vmem:[%s4 + $0x18] sm:$0xf]
    %v126 = vld [vmem:[%s4 + $0x1c] sm:$0xf]
    %v127 = vld [vmem:[%s4 + $0x20] sm:$0xf]
    %v128 = vld [vmem:[%s4 + $0x24] sm:$0xf]
    %v129 = vld [vmem:[%s4 + $0x28] sm:$0xf]
    %v130 = vld [vmem:[%s4 + $0x2c] sm:$0xf]
    %v131 = vld [vmem:[%s4 + $0x30] sm:$0xf]
    %v132 = vld [vmem:[%s4 + $0x34] sm:$0xf]
    %v133 = vld [vmem:[%s4 + $0x38] sm:$0xf]
    %v134 = vld [vmem:[%s4 + $0x3c] sm:$0xf]
    %v135 = vld [vmem:[%s5] sm:$0x1]
    %v137 = vlaneseq
    %v138 = vshrl.u32 %v137, 7
    %v139 = vsub.s32 0, %v138
    %v140 = vrot.slane %v135, %v139
    %v158 = vunpack.c.l.b16 %v119
    %v159 = vunpack.c.l.b16 %v120
    %v160 = vunpack.c.l.b16 %v121
    %v161 = vunpack.c.l.b16 %v122
    %v162 = vunpack.c.l.b16 %v123
    %v163 = vunpack.c.l.b16 %v124
    %v164 = vunpack.c.l.b16 %v125
    %v165 = vunpack.c.l.b16 %v126
    %v166 = vunpack.c.l.b16 %v127
    %v167 = vunpack.c.l.b16 %v128
    %v168 = vunpack.c.l.b16 %v129
    %v169 = vunpack.c.l.b16 %v130
    %v170 = vunpack.c.l.b16 %v131
    %v171 = vunpack.c.l.b16 %v132
    %v172 = vunpack.c.l.b16 %v133
    %v173 = vunpack.c.l.b16 %v134
    %v174 = vpack.c.b16 %v159, %v158
    %v175 = vpack.c.b16 %v161, %v160
    %v176 = vpack.c.b16 %v163, %v162
    %v177 = vpack.c.b16 %v165, %v164
    %v178 = vpack.c.b16 %v167, %v166
    %v179 = vpack.c.b16 %v169, %v168
    %v180 = vpack.c.b16 %v171, %v170
    %v181 = vpack.c.b16 %v173, %v172
    %190 = vmatprep.subr.bf16.mxu0 0
    %191 = vmatpush1.bf16.msra.mxu0 %v174
    %192 = vmatprep.subr.bf16.mxu0 0
    %193 = vmatpush1.bf16.msra.mxu0 %v175
    %194 = vmatprep.subr.bf16.mxu0 0
    %195 = vmatpush1.bf16.msra.mxu0 %v176
    %196 = vmatprep.subr.bf16.mxu0 0
    %197 = vmatpush1.bf16.msra.mxu0 %v177
    %198 = vmatprep.subr.bf16.mxu0 0
    %199 = vmatpush1.bf16.msra.mxu0 %v178
    %200 = vmatprep.subr.bf16.mxu0 0
    %201 = vmatpush1.bf16.msra.mxu0 %v179
    %202 = vmatprep.subr.bf16.mxu0 0
    %203 = vmatpush1.bf16.msra.mxu0 %v180
    %204 = vmatprep.subr.bf16.mxu0 0
    %205 = vmatpush1.bf16.msra.mxu0 %v181
    %206 = vmatprep.subr.bf16.mxu0 0
    %207 = vmatpush1.bf16.msra.mxu0 0
    %208 = vmatprep.subr.bf16.mxu0 0
    %209 = vmatpush1.bf16.msra.mxu0 0
    %210 = vmatprep.subr.bf16.mxu0 0
    %211 = vmatpush1.bf16.msra.mxu0 0
    %212 = vmatprep.subr.bf16.mxu0 0
    %213 = vmatpush1.bf16.msra.mxu0 0
    %214 = vmatprep.subr.bf16.mxu0 0
    %215 = vmatpush1.bf16.msra.mxu0 0
    %216 = vmatprep.subr.bf16.mxu0 0
    %217 = vmatpush1.bf16.msra.mxu0 0
    %218 = vmatprep.subr.bf16.mxu0 0
    %219 = vmatpush1.bf16.msra.mxu0 0
    %220 = vmatprep.subr.bf16.mxu0 0
    %221 = vmatpush1.bf16.msra.mxu0 0
    %222 = vmatprep.mubr.bf16.mxu0 0
    %223 = vmatmul.mubr.bf16.gmra.mrb[0].mxu0 %v118
    %v224 = vpop.f32.mrb[0].mxu0
    %v225 = vadd.f32 %v140, %v224
    %v226 = vpop.f32.mrb[0].mxu0
    %v227 = vpop.f32.mrb[0].mxu0
    %v228 = vadd.f32 %v140, %v227
    %v229 = vpop.f32.mrb[0].mxu0
    %230 = vdwg.mxu0
    %vm231 = vcmask 130048
    %232 = vst.msk [vmem:[#allocation3] sm:$0xff] %vm231, %v225
    %vm233 = vcmask 123904
    %234 = vst.msk [vmem:[#allocation3 + $0x8] sm:$0x3] %vm233, %v228
    // Predicated region
    $region26: #{_mlp_forward.1} parent=1 // pred_check
      _
    $region27: #{_mlp_forward.1} parent=1 // pred_check_branch
      %236 = sbr.rel (0) target = $region29
    $region28: #{_mlp_forward.1} parent=1 // pred_region
      %s238 = ssub.s32 256, 256
      %239 = vsyncadd [#allocation4], %s238
      %s240 = sshll.u32 [#allocation3], 4
      %s241 = int_to_ptr.vmem [resolvable:$true] %s240
      %246 = dma.vmem_to_hbm [thread:$0]  %s241, 256, %s6, [#allocation4], 128, 128, 8
    $region29: #{_mlp_forward.1} parent=1 // pred_fallthru
      _
    // Predicated region
    $region30: #{_mlp_forward.1} parent=1 // pred_check
      _
    $region31: #{_mlp_forward.1} parent=1 // pred_check_branch
      %248 = sbr.rel (0) target = $region33
    $region32: #{_mlp_forward.1} parent=1 // pred_region
      %249 = dma.done [#allocation4], 256
    $region33: #{_mlp_forward.1} parent=1 // pred_fallthru
      _
    %250 = vsyncpa [#allocation4], 1

</llo_original>
